<compile_context>
chip_gen: v7x
topology: tpu7x:2x2x1
jax: 0.10.0
libtpu: 0.0.40
codegen_flags: <defaults>
</compile_context>

<pallas_src>
import functools

import jax
import jax.numpy as jnp
from jax import lax
from jax.experimental import pallas as pl
from jax.experimental.pallas import tpu as pltpu


_MET_W = 128   # lane-dense metrics slab width (lane 0 = pearson, lane 1 = MAE)
_QB = 8        # queries processed per grid step (one f32 sublane tile)


def _round_up(x: int, m: int) -> int:
    return ((x + m - 1) // m) * m


# ---------------------------------------------------------------------------
# Fused kernel: distances -> top-k -> fused gather -> aggregate -> metrics
# ---------------------------------------------------------------------------
def _fused_label_transfer_kernel(x_ref, seqsim_ref, norms_ref, emb_ref, labels_ref,
                                 true_ref, labels_out_ref, metrics_out_ref,
                                 *, top_k: int, l_valid: int):
    q = x_ref[...]               # (QB, Dp)  query embeddings (f32, cast to bf16 below)
    seq_sim = seqsim_ref[...]    # (QB, Np)  alignment-identity scores, -inf in padded lanes
    norms = norms_ref[...]       # (1,  Np)  precomputed ||e||^2, -inf in padded lanes
    emb = emb_ref[...]           # (Np, Dp)  lookup embeddings (bf16)
    labels = labels_ref[...]     # (Np, Lp)  per-lookup transferred-label table (f32)
    t = true_ref[...]            # (QB, Lp)  true per-residue labels of the queries (f32)

    qb, n_pad = seq_sim.shape
    l_pad = labels.shape[1]
    k = top_k

    # ---- EAT scores: ||e||^2 - 2 q.e  (rank-equivalent to euclidean distance: the
    # dropped +||q||^2 and sqrt are monotone per query).  bf16 MXU operands; f32 acc.
    dots = lax.dot_general(q.astype(jnp.bfloat16), emb, (((1,), (1,)), ((), ())),
                           preferred_element_type=jnp.float32)            # (QB, Np)
    eat_scores = norms - 2.0 * dots                                       # (QB, Np)

    lane_n = lax.broadcasted_iota(jnp.int32, (qb, n_pad), 1)

    def topk_onehots(scores):
        # NOTE: the reference uses torch.topk(...).indices (LARGEST) for BOTH branches,
        # so the EAT branch literally selects the most distant hits; reproduced as-is.
        s = scores
        ohs = []
        for _ in range(k):
            mval = jnp.max(s, axis=1, keepdims=True)                       # (QB, 1)
            idx = jnp.min(jnp.where(s == mval, lane_n, n_pad),
                          axis=1, keepdims=True)                           # lowest-index tie
            sel = lane_n == idx
            ohs.append(sel.astype(jnp.float32))                            # (QB, Np)
            s = jnp.where(sel, -jnp.inf, s)
        return ohs

    # ---- fused gather: stack all 2K one-hot row sets and do ONE (2K*QB, N) x (N, L)
    # MXU matmul instead of 2K separate M=1 matmuls.  Labels stay f32 -> exact gather.
    ohs = topk_onehots(seq_sim) + topk_onehots(eat_scores)                 # 2K x (QB, Np)
    oh_all = jnp.concatenate(ohs, axis=0)                                  # (2K*QB, Np)
    rows_all = jnp.dot(oh_all, labels, preferred_element_type=jnp.float32)  # (2K*QB, Lp)

    def lower_median(rows):
        kk = len(rows)
        if kk == 1:
            return rows[0]
        if kk == 4:
            # partial selection network for the 2nd smallest of 4 (= torch.median's
            # lower median for even K): 7 min/max ops instead of a full sort.
            lo1 = jnp.minimum(rows[0], rows[1]); hi1 = jnp.maximum(rows[0], rows[1])
            lo2 = jnp.minimum(rows[2], rows[3]); hi2 = jnp.maximum(rows[2], rows[3])
            return jnp.minimum(jnp.maximum(lo1, lo2), jnp.minimum(hi1, hi2))
        # general small static K: odd-even transposition sort, take rank (K-1)//2
        srt = list(rows)
        for pp in range(kk):
            for i in range(pp % 2, kk - 1, 2):
                lo = jnp.minimum(srt[i], srt[i + 1]); hi = jnp.maximum(srt[i], srt[i + 1])
                srt[i], srt[i + 1] = lo, hi
        return srt[(kk - 1) // 2]

    preds = []
    inv_k = 1.0 / k
    for b in range(2):                                   # 0 = HBI (seq-sim), 1 = EAT
        rows = [rows_all[(b * k + j) * qb:(b * k + j + 1) * qb, :] for j in range(k)]
        mean_row = rows[0]
        for r in rows[1:]:
            mean_row = mean_row + r
        preds += [rows[0], mean_row * inv_k, lower_median(rows)]

    preds_all = jnp.concatenate(preds, axis=0)           # (6*QB, Lp) lane-dense single store
    labels_out_ref[...] = preds_all

    # ---- metrics on the stacked prediction block (one reduce pass instead of 6) ----
    inv_l = 1.0 / l_valid
    lmask = None
    if l_pad != l_valid:
        lmask = (lax.broadcasted_iota(jnp.int32, (qb, l_pad), 1) < l_valid
                 ).astype(jnp.float32)
    tm = jnp.sum(t, axis=1, keepdims=True) * inv_l       # padded lanes are 0 -> sums exact
    tc = t - tm
    if lmask is not None:
        tc = tc * lmask
    tv = jnp.sum(tc * tc, axis=1, keepdims=True)

    t6 = jnp.concatenate([t] * 6, axis=0)                # (6*QB, Lp)
    tc6 = jnp.concatenate([tc] * 6, axis=0)
    tv6 = jnp.concatenate([tv] * 6, axis=0)

    pm = jnp.sum(preds_all, axis=1, keepdims=True) * inv_l
    pc = preds_all - pm
    if lmask is not None:
        pc = pc * jnp.concatenate([lmask] * 6, axis=0)
    cov = jnp.sum(pc * tc6, axis=1, keepdims=True)
    pv = jnp.sum(pc * pc, axis=1, keepdims=True)
    eps = jnp.float32(1e-12)   # guard: returns ~0 for constant preds (torchmetrics -> NaN)
    pearson = cov * lax.rsqrt(pv * tv6 + eps)                                  # (6*QB, 1)
    mae = jnp.sum(jnp.abs(preds_all - t6), axis=1, keepdims=True) * inv_l      # (6*QB, 1)

    met_w = metrics_out_ref.shape[1]
    lane_m = lax.broadcasted_iota(jnp.int32, (6 * qb, met_w), 1)
    metrics_out_ref[...] = (pearson * (lane_m == 0).astype(jnp.float32)
                            + mae * (lane_m == 1).astype(jnp.float32))         # (6*QB, 128)


# ---------------------------------------------------------------------------
# Wrapper: pad to lane/sublane-friendly shapes, precompute norms, launch grid
# ---------------------------------------------------------------------------
def fused_label_transfer(x, seq_sim, lookup_emb, lookup_labels, true_label, top_k):
    x = jnp.asarray(x, jnp.float32)
    seq_sim = jnp.asarray(seq_sim, jnp.float32)
    true_label = jnp.asarray(true_label, jnp.float32)
    if x.ndim == 1:
        x = x[None, :]
    if seq_sim.ndim == 1:
        seq_sim = seq_sim[None, :]
    if true_label.ndim == 1:
        true_label = true_label[None, :]

    Q, D = x.shape
    N, _ = lookup_emb.shape
    L = lookup_labels.shape[1]
    assert top_k <= N, "top_k must not exceed the lookup-set size"

    qb = _QB
    q_pad = _round_up(Q, qb)
    n_pad = _round_up(N, 128)
    d_pad = _round_up(D, 128)
    l_pad = _round_up(L, 128)
    g = q_pad // qb

    emb_f32 = jnp.asarray(lookup_emb, jnp.float32)
    # query-independent squared norms precomputed ONCE (not per kernel call)
    norms = jnp.sum(emb_f32 * emb_f32, axis=1)[None, :]                     # (1, N)

    x_p = jnp.pad(x, ((0, q_pad - Q), (0, d_pad - D)))
    seq_p = jnp.pad(seq_sim, ((0, q_pad - Q), (0, n_pad - N)),
                    constant_values=-jnp.inf)
    norms_p = jnp.pad(norms, ((0, 0), (0, n_pad - N)), constant_values=-jnp.inf)
    emb_p = jnp.pad(emb_f32, ((0, n_pad - N), (0, d_pad - D))).astype(jnp.bfloat16)
    labels_p = jnp.pad(jnp.asarray(lookup_labels, jnp.float32),
                       ((0, n_pad - N), (0, l_pad - L)))
    true_p = jnp.pad(true_label, ((0, q_pad - Q), (0, l_pad - L)))

    # TODO(synk): at realistic lookup-DB sizes (e.g. 1e5 x 1024) tile N with a grid +
    # BlockSpec, carry a running top-k in VMEM scratch across an "arbitrary" N axis, keep
    # the label table in HBM (memory_space=pl.ANY) and DMA-gather only the 2K winning rows
    # in the epilogue; size tiles against v7x's 64 MiB VMEM with explicit vmem_limit_bytes.
    kernel = functools.partial(_fused_label_transfer_kernel, top_k=top_k, l_valid=L)
    labels_out, metrics_out = pl.pallas_call(
        kernel,
        out_shape=(
            jax.ShapeDtypeStruct((g * 6 * qb, l_pad), jnp.float32),
            jax.ShapeDtypeStruct((g * 6 * qb, _MET_W), jnp.float32),
        ),
        grid_spec=pltpu.PrefetchScalarGridSpec(
            num_scalar_prefetch=0,
            grid=(g,),
            in_specs=[
                pl.BlockSpec((qb, d_pad), lambda i: (i, 0)),       # queries
                pl.BlockSpec((qb, n_pad), lambda i: (i, 0)),       # seq-sim scores
                pl.BlockSpec((1, n_pad), lambda i: (0, 0)),        # precomputed ||e||^2
                pl.BlockSpec((n_pad, d_pad), lambda i: (0, 0)),    # lookup emb (bf16)
                pl.BlockSpec((n_pad, l_pad), lambda i: (0, 0)),    # label table (f32)
                pl.BlockSpec((qb, l_pad), lambda i: (i, 0)),       # true labels
            ],
            out_specs=(
                pl.BlockSpec((6 * qb, l_pad), lambda i: (i, 0)),
                pl.BlockSpec((6 * qb, _MET_W), lambda i: (i, 0)),
            ),
        ),
        compiler_params=pltpu.CompilerParams(
            dimension_semantics=("parallel",)),   # v7x: query blocks split across 2 TCs
    )(x_p, seq_p, norms_p, emb_p, labels_p, true_p)

    # unpack: per block rows are [pred-type major][query within block]
    labels_out = labels_out.reshape(g, 6, qb, l_pad).transpose(1, 0, 2, 3)
    labels_out = labels_out.reshape(6, q_pad, l_pad)[:, :Q, :L]             # (6, Q, L)
    metrics_out = metrics_out.reshape(g, 6, qb, _MET_W).transpose(1, 0, 2, 3)
    metrics_out = metrics_out.reshape(6, q_pad, _MET_W)[:, :Q, :]
    pearson = metrics_out[:, :, 0]                                          # (6, Q)
    mae = metrics_out[:, :, 1]                                              # (6, Q)
    return labels_out, pearson, mae


# ---------------------------------------------------------------------------
# Forward pass (glue) — mirrors LabelTransferBaseline.forward numerically
# ---------------------------------------------------------------------------
def label_transfer_baseline_forward(x, seq_sim, lookup_emb, lookup_labels,
                                    true_label, top_k=4):
    """HBI branch (seq-sim top-k) and EAT branch (euclidean top-k), each yielding
    (top-1, top-k mean, top-k lower-median) transferred labels, then (pearson, MAE)
    metrics of every transferred label against the true label.  Batched over queries.

    Returns:
      labels6 : (6, Q, L) rows = hbi_top1, hbi_mean, hbi_median, eat_top1, eat_mean, eat_median
      pearson : (6, Q)    pearson_corrcoef per transferred label / query
      mae     : (6, Q)    mean_absolute_error per transferred label / query
    """
    # TODO(synk): transfer_labels()/calculate_sequence_similarity() need global pairwise
    # sequence alignment (BLOSUM62, PairwiseAligner, fasta, multiprocessing) which has no
    # Pallas equivalent; seq-sim scores and the per-lookup label table are inputs here.
    return fused_label_transfer(x, seq_sim, lookup_emb, lookup_labels, true_label, top_k)


if __name__ == "__main__":
    key = jax.random.PRNGKey(0)
    N, D, L, K, Q = 16, 32, 128, 4, 16
    k1, k2, k3, k4, k5 = jax.random.split(key, 5)

    x = jax.random.normal(k1, (Q, D), jnp.float32)                 # query per-protein embeddings
    lookup_emb = jax.random.normal(k2, (N, D), jnp.float32)        # lookup_per_prot_emb
    seq_sim = jax.random.uniform(k3, (Q, N), jnp.float32) * 100.0  # synthetic alignment identities
    lookup_labels = jax.random.uniform(k4, (N, L), jnp.float32)    # synthetic per-residue RSA labels
    true_label = jax.random.uniform(k5, (Q, L), jnp.float32)       # synthetic true RSA labels

    fwd = jax.jit(functools.partial(label_transfer_baseline_forward, top_k=K))
    labels6, pearson, mae = fwd(x, seq_sim, lookup_emb, lookup_labels, true_label)
    labels6, pearson, mae = jax.block_until_ready((labels6, pearson, mae))

    labels_np, pearson_np, mae_np = jax.device_get((labels6, pearson, mae))
    assert labels_np.shape == (6, Q, L)
    assert pearson_np.shape == (6, Q) and mae_np.shape == (6, Q)
    assert bool(jnp.all(jnp.isfinite(labels6)))
    assert bool(jnp.all(jnp.abs(pearson) <= 1.0 + 1e-3))
    assert bool(jnp.all(mae >= 0.0))
    print("KERNEL_OK")
</pallas_src>

<mosaic_0001>
module attributes {stable_mosaic.version = 11 : i64} {
  func.func @_fused_label_transfer_kernel(%arg0: i32, %arg1: memref<8x128xf32, #tpu.memory_space<vmem>>, %arg2: memref<8x128xf32, #tpu.memory_space<vmem>>, %arg3: memref<1x128xf32, #tpu.memory_space<vmem>>, %arg4: memref<128x128xbf16, #tpu.memory_space<vmem>>, %arg5: memref<128x128xf32, #tpu.memory_space<vmem>>, %arg6: memref<8x128xf32, #tpu.memory_space<vmem>>, %arg7: memref<48x128xf32, #tpu.memory_space<vmem>>, %arg8: memref<48x128xf32, #tpu.memory_space<vmem>>) attributes {dimension_semantics = [#tpu.dimension_semantics<parallel>], iteration_bounds = array<i64: 2>, scalar_prefetch = 0 : i64, scratch_operands = 0 : i64, tpu.core_type = #tpu.core_type<tc>, window_params = [{transform_indices = @transform_0, window_bounds = array<i64: 8, 128>}, {transform_indices = @transform_1, window_bounds = array<i64: 8, 128>}, {pipeline_mode = #tpu.pipeline_mode<synchronous>, transform_indices = @transform_2, window_bounds = array<i64: 1, 128>}, {pipeline_mode = #tpu.pipeline_mode<synchronous>, transform_indices = @transform_3, window_bounds = array<i64: 128, 128>}, {pipeline_mode = #tpu.pipeline_mode<synchronous>, transform_indices = @transform_4, window_bounds = array<i64: 128, 128>}, {transform_indices = @transform_5, window_bounds = array<i64: 8, 128>}, {transform_indices = @transform_6, window_bounds = array<i64: 48, 128>}, {transform_indices = @transform_7, window_bounds = array<i64: 48, 128>}]} {
    %c0 = arith.constant 0 : index
    %c0_0 = arith.constant 0 : index
    %0 = vector.load %arg1[%c0, %c0_0] : memref<8x128xf32, #tpu.memory_space<vmem>>, vector<8x128xf32>
    %c0_1 = arith.constant 0 : index
    %c0_2 = arith.constant 0 : index
    %1 = vector.load %arg2[%c0_1, %c0_2] : memref<8x128xf32, #tpu.memory_space<vmem>>, vector<8x128xf32>
    %c0_3 = arith.constant 0 : index
    %c0_4 = arith.constant 0 : index
    %2 = vector.load %arg3[%c0_3, %c0_4] : memref<1x128xf32, #tpu.memory_space<vmem>>, vector<1x128xf32>
    %c0_5 = arith.constant 0 : index
    %c0_6 = arith.constant 0 : index
    %3 = vector.load %arg4[%c0_5, %c0_6] : memref<128x128xbf16, #tpu.memory_space<vmem>>, vector<128x128xbf16>
    %c0_7 = arith.constant 0 : index
    %c0_8 = arith.constant 0 : index
    %4 = vector.load %arg5[%c0_7, %c0_8] : memref<128x128xf32, #tpu.memory_space<vmem>>, vector<128x128xf32>
    %c0_9 = arith.constant 0 : index
    %c0_10 = arith.constant 0 : index
    %5 = vector.load %arg6[%c0_9, %c0_10] : memref<8x128xf32, #tpu.memory_space<vmem>>, vector<8x128xf32>
    %6 = arith.truncf %0 : vector<8x128xf32> to vector<8x128xbf16>
    %cst = arith.constant dense<0.000000e+00> : vector<8x128xf32>
    %7 = tpu.matmul %6, %3, %cst {dimension_numbers = #tpu.dot_dimension_numbers<[1], [1], [0], [0], [0, 0, 1, 0], [], []>} : vector<8x128xbf16>, vector<128x128xbf16>, vector<8x128xf32> -> vector<8x128xf32>
    %cst_11 = arith.constant 2.000000e+00 : f32
    %8 = vector.broadcast %cst_11 : f32 to vector<8x128xf32>
    %9 = arith.mulf %8, %7 : vector<8x128xf32>
    %10 = vector.broadcast %2 : vector<1x128xf32> to vector<8x128xf32>
    %11 = arith.subf %10, %9 : vector<8x128xf32>
    %12 = tpu.iota {dimensions = array<i32: 1>} : vector<8x128xi32>
    %cst_12 = arith.constant dense<0xFF800000> : vector<8xf32>
    %13 = vector.multi_reduction <maximumf>, %1, %cst_12 [1] : vector<8x128xf32> to vector<8xf32>
    %14 = vector.shape_cast %13 : vector<8xf32> to vector<8x1xf32>
    %15 = vector.broadcast %14 : vector<8x1xf32> to vector<8x128xf32>
    %16 = arith.cmpf oeq, %1, %15 : vector<8x128xf32>
    %c128_i32 = arith.constant 128 : i32
    %17 = vector.broadcast %c128_i32 : i32 to vector<8x128xi32>
    %18 = arith.select %16, %12, %17 : vector<8x128xi1>, vector<8x128xi32>
    %cst_13 = arith.constant dense<2147483647> : vector<8xi32>
    %19 = vector.multi_reduction <minsi>, %18, %cst_13 [1] : vector<8x128xi32> to vector<8xi32>
    %20 = vector.shape_cast %19 : vector<8xi32> to vector<8x1xi32>
    %21 = vector.broadcast %20 : vector<8x1xi32> to vector<8x128xi32>
    %22 = arith.cmpi eq, %12, %21 : vector<8x128xi32>
    %23 = arith.extui %22 : vector<8x128xi1> to vector<8x128xi32>
    %24 = arith.sitofp %23 : vector<8x128xi32> to vector<8x128xf32>
    %cst_14 = arith.constant 0xFF800000 : f32
    %25 = vector.broadcast %cst_14 : f32 to vector<8x128xf32>
    %26 = arith.select %22, %25, %1 : vector<8x128xi1>, vector<8x128xf32>
    %cst_15 = arith.constant dense<0xFF800000> : vector<8xf32>
    %27 = vector.multi_reduction <maximumf>, %26, %cst_15 [1] : vector<8x128xf32> to vector<8xf32>
    %28 = vector.shape_cast %27 : vector<8xf32> to vector<8x1xf32>
    %29 = vector.broadcast %28 : vector<8x1xf32> to vector<8x128xf32>
    %30 = arith.cmpf oeq, %26, %29 : vector<8x128xf32>
    %c128_i32_16 = arith.constant 128 : i32
    %31 = vector.broadcast %c128_i32_16 : i32 to vector<8x128xi32>
    %32 = arith.select %30, %12, %31 : vector<8x128xi1>, vector<8x128xi32>
    %cst_17 = arith.constant dense<2147483647> : vector<8xi32>
    %33 = vector.multi_reduction <minsi>, %32, %cst_17 [1] : vector<8x128xi32> to vector<8xi32>
    %34 = vector.shape_cast %33 : vector<8xi32> to vector<8x1xi32>
    %35 = vector.broadcast %34 : vector<8x1xi32> to vector<8x128xi32>
    %36 = arith.cmpi eq, %12, %35 : vector<8x128xi32>
    %37 = arith.extui %36 : vector<8x128xi1> to vector<8x128xi32>
    %38 = arith.sitofp %37 : vector<8x128xi32> to vector<8x128xf32>
    %cst_18 = arith.constant 0xFF800000 : f32
    %39 = vector.broadcast %cst_18 : f32 to vector<8x128xf32>
    %40 = arith.select %36, %39, %26 : vector<8x128xi1>, vector<8x128xf32>
    %cst_19 = arith.constant dense<0xFF800000> : vector<8xf32>
    %41 = vector.multi_reduction <maximumf>, %40, %cst_19 [1] : vector<8x128xf32> to vector<8xf32>
    %42 = vector.shape_cast %41 : vector<8xf32> to vector<8x1xf32>
    %43 = vector.broadcast %42 : vector<8x1xf32> to vector<8x128xf32>
    %44 = arith.cmpf oeq, %40, %43 : vector<8x128xf32>
    %c128_i32_20 = arith.constant 128 : i32
    %45 = vector.broadcast %c128_i32_20 : i32 to vector<8x128xi32>
    %46 = arith.select %44, %12, %45 : vector<8x128xi1>, vector<8x128xi32>
    %cst_21 = arith.constant dense<2147483647> : vector<8xi32>
    %47 = vector.multi_reduction <minsi>, %46, %cst_21 [1] : vector<8x128xi32> to vector<8xi32>
    %48 = vector.shape_cast %47 : vector<8xi32> to vector<8x1xi32>
    %49 = vector.broadcast %48 : vector<8x1xi32> to vector<8x128xi32>
    %50 = arith.cmpi eq, %12, %49 : vector<8x128xi32>
    %51 = arith.extui %50 : vector<8x128xi1> to vector<8x128xi32>
    %52 = arith.sitofp %51 : vector<8x128xi32> to vector<8x128xf32>
    %cst_22 = arith.constant 0xFF800000 : f32
    %53 = vector.broadcast %cst_22 : f32 to vector<8x128xf32>
    %54 = arith.select %50, %53, %40 : vector<8x128xi1>, vector<8x128xf32>
    %cst_23 = arith.constant dense<0xFF800000> : vector<8xf32>
    %55 = vector.multi_reduction <maximumf>, %54, %cst_23 [1] : vector<8x128xf32> to vector<8xf32>
    %56 = vector.shape_cast %55 : vector<8xf32> to vector<8x1xf32>
    %57 = vector.broadcast %56 : vector<8x1xf32> to vector<8x128xf32>
    %58 = arith.cmpf oeq, %54, %57 : vector<8x128xf32>
    %c128_i32_24 = arith.constant 128 : i32
    %59 = vector.broadcast %c128_i32_24 : i32 to vector<8x128xi32>
    %60 = arith.select %58, %12, %59 : vector<8x128xi1>, vector<8x128xi32>
    %cst_25 = arith.constant dense<2147483647> : vector<8xi32>
    %61 = vector.multi_reduction <minsi>, %60, %cst_25 [1] : vector<8x128xi32> to vector<8xi32>
    %62 = vector.shape_cast %61 : vector<8xi32> to vector<8x1xi32>
    %63 = vector.broadcast %62 : vector<8x1xi32> to vector<8x128xi32>
    %64 = arith.cmpi eq, %12, %63 : vector<8x128xi32>
    %65 = arith.extui %64 : vector<8x128xi1> to vector<8x128xi32>
    %66 = arith.sitofp %65 : vector<8x128xi32> to vector<8x128xf32>
    %cst_26 = arith.constant dense<0xFF800000> : vector<8xf32>
    %67 = vector.multi_reduction <maximumf>, %11, %cst_26 [1] : vector<8x128xf32> to vector<8xf32>
    %68 = vector.shape_cast %67 : vector<8xf32> to vector<8x1xf32>
    %69 = vector.broadcast %68 : vector<8x1xf32> to vector<8x128xf32>
    %70 = arith.cmpf oeq, %11, %69 : vector<8x128xf32>
    %c128_i32_27 = arith.constant 128 : i32
    %71 = vector.broadcast %c128_i32_27 : i32 to vector<8x128xi32>
    %72 = arith.select %70, %12, %71 : vector<8x128xi1>, vector<8x128xi32>
    %cst_28 = arith.constant dense<2147483647> : vector<8xi32>
    %73 = vector.multi_reduction <minsi>, %72, %cst_28 [1] : vector<8x128xi32> to vector<8xi32>
    %74 = vector.shape_cast %73 : vector<8xi32> to vector<8x1xi32>
    %75 = vector.broadcast %74 : vector<8x1xi32> to vector<8x128xi32>
    %76 = arith.cmpi eq, %12, %75 : vector<8x128xi32>
    %77 = arith.extui %76 : vector<8x128xi1> to vector<8x128xi32>
    %78 = arith.sitofp %77 : vector<8x128xi32> to vector<8x128xf32>
    %cst_29 = arith.constant 0xFF800000 : f32
    %79 = vector.broadcast %cst_29 : f32 to vector<8x128xf32>
    %80 = arith.select %76, %79, %11 : vector<8x128xi1>, vector<8x128xf32>
    %cst_30 = arith.constant dense<0xFF800000> : vector<8xf32>
    %81 = vector.multi_reduction <maximumf>, %80, %cst_30 [1] : vector<8x128xf32> to vector<8xf32>
    %82 = vector.shape_cast %81 : vector<8xf32> to vector<8x1xf32>
    %83 = vector.broadcast %82 : vector<8x1xf32> to vector<8x128xf32>
    %84 = arith.cmpf oeq, %80, %83 : vector<8x128xf32>
    %c128_i32_31 = arith.constant 128 : i32
    %85 = vector.broadcast %c128_i32_31 : i32 to vector<8x128xi32>
    %86 = arith.select %84, %12, %85 : vector<8x128xi1>, vector<8x128xi32>
    %cst_32 = arith.constant dense<2147483647> : vector<8xi32>
    %87 = vector.multi_reduction <minsi>, %86, %cst_32 [1] : vector<8x128xi32> to vector<8xi32>
    %88 = vector.shape_cast %87 : vector<8xi32> to vector<8x1xi32>
    %89 = vector.broadcast %88 : vector<8x1xi32> to vector<8x128xi32>
    %90 = arith.cmpi eq, %12, %89 : vector<8x128xi32>
    %91 = arith.extui %90 : vector<8x128xi1> to vector<8x128xi32>
    %92 = arith.sitofp %91 : vector<8x128xi32> to vector<8x128xf32>
    %cst_33 = arith.constant 0xFF800000 : f32
    %93 = vector.broadcast %cst_33 : f32 to vector<8x128xf32>
    %94 = arith.select %90, %93, %80 : vector<8x128xi1>, vector<8x128xf32>
    %cst_34 = arith.constant dense<0xFF800000> : vector<8xf32>
    %95 = vector.multi_reduction <maximumf>, %94, %cst_34 [1] : vector<8x128xf32> to vector<8xf32>
    %96 = vector.shape_cast %95 : vector<8xf32> to vector<8x1xf32>
    %97 = vector.broadcast %96 : vector<8x1xf32> to vector<8x128xf32>
    %98 = arith.cmpf oeq, %94, %97 : vector<8x128xf32>
    %c128_i32_35 = arith.constant 128 : i32
    %99 = vector.broadcast %c128_i32_35 : i32 to vector<8x128xi32>
    %100 = arith.select %98, %12, %99 : vector<8x128xi1>, vector<8x128xi32>
    %cst_36 = arith.constant dense<2147483647> : vector<8xi32>
    %101 = vector.multi_reduction <minsi>, %100, %cst_36 [1] : vector<8x128xi32> to vector<8xi32>
    %102 = vector.shape_cast %101 : vector<8xi32> to vector<8x1xi32>
    %103 = vector.broadcast %102 : vector<8x1xi32> to vector<8x128xi32>
    %104 = arith.cmpi eq, %12, %103 : vector<8x128xi32>
    %105 = arith.extui %104 : vector<8x128xi1> to vector<8x128xi32>
    %106 = arith.sitofp %105 : vector<8x128xi32> to vector<8x128xf32>
    %cst_37 = arith.constant 0xFF800000 : f32
    %107 = vector.broadcast %cst_37 : f32 to vector<8x128xf32>
    %108 = arith.select %104, %107, %94 : vector<8x128xi1>, vector<8x128xf32>
    %cst_38 = arith.constant dense<0xFF800000> : vector<8xf32>
    %109 = vector.multi_reduction <maximumf>, %108, %cst_38 [1] : vector<8x128xf32> to vector<8xf32>
    %110 = vector.shape_cast %109 : vector<8xf32> to vector<8x1xf32>
    %111 = vector.broadcast %110 : vector<8x1xf32> to vector<8x128xf32>
    %112 = arith.cmpf oeq, %108, %111 : vector<8x128xf32>
    %c128_i32_39 = arith.constant 128 : i32
    %113 = vector.broadcast %c128_i32_39 : i32 to vector<8x128xi32>
    %114 = arith.select %112, %12, %113 : vector<8x128xi1>, vector<8x128xi32>
    %cst_40 = arith.constant dense<2147483647> : vector<8xi32>
    %115 = vector.multi_reduction <minsi>, %114, %cst_40 [1] : vector<8x128xi32> to vector<8xi32>
    %116 = vector.shape_cast %115 : vector<8xi32> to vector<8x1xi32>
    %117 = vector.broadcast %116 : vector<8x1xi32> to vector<8x128xi32>
    %118 = arith.cmpi eq, %12, %117 : vector<8x128xi32>
    %119 = arith.extui %118 : vector<8x128xi1> to vector<8x128xi32>
    %120 = arith.sitofp %119 : vector<8x128xi32> to vector<8x128xf32>
    %121 = tpu.concatenate %24, %38, %52, %66, %78, %92, %106, %120 in 0 : vector<8x128xf32>, vector<8x128xf32>, vector<8x128xf32>, vector<8x128xf32>, vector<8x128xf32>, vector<8x128xf32>, vector<8x128xf32>, vector<8x128xf32> -> vector<64x128xf32>
    %cst_41 = arith.constant dense<0.000000e+00> : vector<64x128xf32>
    %122 = tpu.matmul %121, %4, %cst_41 {dimension_numbers = #tpu.dot_dimension_numbers<[1], [0], [0], [1], [0, 0, 1, 1], [], []>} : vector<64x128xf32>, vector<128x128xf32>, vector<64x128xf32> -> vector<64x128xf32>
    %123 = vector.extract_strided_slice %122 {offsets = [0, 0], sizes = [8, 128], strides = [1, 1]} : vector<64x128xf32> to vector<8x128xf32>
    %124 = vector.extract_strided_slice %122 {offsets = [8, 0], sizes = [8, 128], strides = [1, 1]} : vector<64x128xf32> to vector<8x128xf32>
    %125 = vector.extract_strided_slice %122 {offsets = [16, 0], sizes = [8, 128], strides = [1, 1]} : vector<64x128xf32> to vector<8x128xf32>
    %126 = vector.extract_strided_slice %122 {offsets = [24, 0], sizes = [8, 128], strides = [1, 1]} : vector<64x128xf32> to vector<8x128xf32>
    %127 = arith.addf %123, %124 : vector<8x128xf32>
    %128 = arith.addf %127, %125 : vector<8x128xf32>
    %129 = arith.addf %128, %126 : vector<8x128xf32>
    %cst_42 = arith.constant 2.500000e-01 : f32
    %130 = vector.broadcast %cst_42 : f32 to vector<8x128xf32>
    %131 = arith.mulf %129, %130 : vector<8x128xf32>
    %132 = arith.minimumf %123, %124 : vector<8x128xf32>
    %133 = arith.maximumf %123, %124 : vector<8x128xf32>
    %134 = arith.minimumf %125, %126 : vector<8x128xf32>
    %135 = arith.maximumf %125, %126 : vector<8x128xf32>
    %136 = arith.maximumf %132, %134 : vector<8x128xf32>
    %137 = arith.minimumf %133, %135 : vector<8x128xf32>
    %138 = arith.minimumf %136, %137 : vector<8x128xf32>
    %139 = vector.extract_strided_slice %122 {offsets = [32, 0], sizes = [8, 128], strides = [1, 1]} : vector<64x128xf32> to vector<8x128xf32>
    %140 = vector.extract_strided_slice %122 {offsets = [40, 0], sizes = [8, 128], strides = [1, 1]} : vector<64x128xf32> to vector<8x128xf32>
    %141 = vector.extract_strided_slice %122 {offsets = [48, 0], sizes = [8, 128], strides = [1, 1]} : vector<64x128xf32> to vector<8x128xf32>
    %142 = vector.extract_strided_slice %122 {offsets = [56, 0], sizes = [8, 128], strides = [1, 1]} : vector<64x128xf32> to vector<8x128xf32>
    %143 = arith.addf %139, %140 : vector<8x128xf32>
    %144 = arith.addf %143, %141 : vector<8x128xf32>
    %145 = arith.addf %144, %142 : vector<8x128xf32>
    %cst_43 = arith.constant 2.500000e-01 : f32
    %146 = vector.broadcast %cst_43 : f32 to vector<8x128xf32>
    %147 = arith.mulf %145, %146 : vector<8x128xf32>
    %148 = arith.minimumf %139, %140 : vector<8x128xf32>
    %149 = arith.maximumf %139, %140 : vector<8x128xf32>
    %150 = arith.minimumf %141, %142 : vector<8x128xf32>
    %151 = arith.maximumf %141, %142 : vector<8x128xf32>
    %152 = arith.maximumf %148, %150 : vector<8x128xf32>
    %153 = arith.minimumf %149, %151 : vector<8x128xf32>
    %154 = arith.minimumf %152, %153 : vector<8x128xf32>
    %155 = tpu.concatenate %123, %131, %138, %139, %147, %154 in 0 : vector<8x128xf32>, vector<8x128xf32>, vector<8x128xf32>, vector<8x128xf32>, vector<8x128xf32>, vector<8x128xf32> -> vector<48x128xf32>
    %c0_44 = arith.constant 0 : index
    %c0_45 = arith.constant 0 : index
    %156 = vector.load %arg7[%c0_44, %c0_45] : memref<48x128xf32, #tpu.memory_space<vmem>>, vector<48x128xf32>
    tpu.vector_store %arg7[%c0_44, %c0_45], %155 {strides = array<i32>} : memref<48x128xf32, #tpu.memory_space<vmem>>, vector<48x128xf32>,
    %cst_46 = arith.constant dense<0.000000e+00> : vector<8xf32>
    %157 = vector.multi_reduction <add>, %5, %cst_46 [1] : vector<8x128xf32> to vector<8xf32>
    %158 = vector.shape_cast %157 : vector<8xf32> to vector<8x1xf32>
    %cst_47 = arith.constant 7.812500e-03 : f32
    %159 = vector.broadcast %cst_47 : f32 to vector<8x1xf32>
    %160 = arith.mulf %158, %159 : vector<8x1xf32>
    %161 = vector.broadcast %160 : vector<8x1xf32> to vector<8x128xf32>
    %162 = arith.subf %5, %161 : vector<8x128xf32>
    %163 = arith.mulf %162, %162 : vector<8x128xf32>
    %cst_48 = arith.constant dense<0.000000e+00> : vector<8xf32>
    %164 = vector.multi_reduction <add>, %163, %cst_48 [1] : vector<8x128xf32> to vector<8xf32>
    %165 = vector.shape_cast %164 : vector<8xf32> to vector<8x1xf32>
    %166 = tpu.concatenate %5, %5, %5, %5, %5, %5 in 0 : vector<8x128xf32>, vector<8x128xf32>, vector<8x128xf32>, vector<8x128xf32>, vector<8x128xf32>, vector<8x128xf32> -> vector<48x128xf32>
    %167 = tpu.concatenate %162, %162, %162, %162, %162, %162 in 0 : vector<8x128xf32>, vector<8x128xf32>, vector<8x128xf32>, vector<8x128xf32>, vector<8x128xf32>, vector<8x128xf32> -> vector<48x128xf32>
    %168 = tpu.concatenate %165, %165, %165, %165, %165, %165 in 0 : vector<8x1xf32>, vector<8x1xf32>, vector<8x1xf32>, vector<8x1xf32>, vector<8x1xf32>, vector<8x1xf32> -> vector<48x1xf32>
    %cst_49 = arith.constant dense<0.000000e+00> : vector<48xf32>
    %169 = vector.multi_reduction <add>, %155, %cst_49 [1] : vector<48x128xf32> to vector<48xf32>
    %170 = vector.shape_cast %169 : vector<48xf32> to vector<48x1xf32>
    %cst_50 = arith.constant 7.812500e-03 : f32
    %171 = vector.broadcast %cst_50 : f32 to vector<48x1xf32>
    %172 = arith.mulf %170, %171 : vector<48x1xf32>
    %173 = vector.broadcast %172 : vector<48x1xf32> to vector<48x128xf32>
    %174 = arith.subf %155, %173 : vector<48x128xf32>
    %175 = arith.mulf %174, %167 : vector<48x128xf32>
    %cst_51 = arith.constant dense<0.000000e+00> : vector<48xf32>
    %176 = vector.multi_reduction <add>, %175, %cst_51 [1] : vector<48x128xf32> to vector<48xf32>
    %177 = vector.shape_cast %176 : vector<48xf32> to vector<48x1xf32>
    %178 = arith.mulf %174, %174 : vector<48x128xf32>
    %cst_52 = arith.constant dense<0.000000e+00> : vector<48xf32>
    %179 = vector.multi_reduction <add>, %178, %cst_52 [1] : vector<48x128xf32> to vector<48xf32>
    %180 = vector.shape_cast %179 : vector<48xf32> to vector<48x1xf32>
    %181 = arith.mulf %180, %168 : vector<48x1xf32>
    %cst_53 = arith.constant 9.99999996E-13 : f32
    %182 = vector.broadcast %cst_53 : f32 to vector<48x1xf32>
    %183 = arith.addf %181, %182 : vector<48x1xf32>
    %184 = math.rsqrt %183 : vector<48x1xf32>
    %185 = arith.mulf %177, %184 : vector<48x1xf32>
    %186 = arith.subf %155, %166 : vector<48x128xf32>
    %187 = math.absf %186 : vector<48x128xf32>
    %cst_54 = arith.constant dense<0.000000e+00> : vector<48xf32>
    %188 = vector.multi_reduction <add>, %187, %cst_54 [1] : vector<48x128xf32> to vector<48xf32>
    %189 = vector.shape_cast %188 : vector<48xf32> to vector<48x1xf32>
    %cst_55 = arith.constant 7.812500e-03 : f32
    %190 = vector.broadcast %cst_55 : f32 to vector<48x1xf32>
    %191 = arith.mulf %189, %190 : vector<48x1xf32>
    %192 = tpu.iota {dimensions = array<i32: 1>} : vector<48x128xi32>
    %c0_i32 = arith.constant 0 : i32
    %193 = vector.broadcast %c0_i32 : i32 to vector<48x128xi32>
    %194 = arith.cmpi eq, %192, %193 : vector<48x128xi32>
    %195 = arith.extui %194 : vector<48x128xi1> to vector<48x128xi32>
    %196 = arith.sitofp %195 : vector<48x128xi32> to vector<48x128xf32>
    %197 = vector.broadcast %185 : vector<48x1xf32> to vector<48x128xf32>
    %198 = arith.mulf %197, %196 : vector<48x128xf32>
    %c1_i32 = arith.constant 1 : i32
    %199 = vector.broadcast %c1_i32 : i32 to vector<48x128xi32>
    %200 = arith.cmpi eq, %192, %199 : vector<48x128xi32>
    %201 = arith.extui %200 : vector<48x128xi1> to vector<48x128xi32>
    %202 = arith.sitofp %201 : vector<48x128xi32> to vector<48x128xf32>
    %203 = vector.broadcast %191 : vector<48x1xf32> to vector<48x128xf32>
    %204 = arith.mulf %203, %202 : vector<48x128xf32>
    %205 = arith.addf %198, %204 : vector<48x128xf32>
    %c0_56 = arith.constant 0 : index
    %c0_57 = arith.constant 0 : index
    %206 = vector.load %arg8[%c0_56, %c0_57] : memref<48x128xf32, #tpu.memory_space<vmem>>, vector<48x128xf32>
    tpu.vector_store %arg8[%c0_56, %c0_57], %205 {strides = array<i32>} : memref<48x128xf32, #tpu.memory_space<vmem>>, vector<48x128xf32>,
    return
  }
  func.func @transform_0(%arg0: i32) -> (i32, i32) {
    %c0_i32 = arith.constant 0 : i32
    %c0_i32_0 = arith.constant 0 : i32
    return %arg0, %c0_i32 : i32, i32
  }
  func.func @transform_1(%arg0: i32) -> (i32, i32) {
    %c0_i32 = arith.constant 0 : i32
    %c0_i32_0 = arith.constant 0 : i32
    return %arg0, %c0_i32 : i32, i32
  }
  func.func @transform_2(%arg0: i32) -> (i32, i32) {
    %c0_i32 = arith.constant 0 : i32
    %c0_i32_0 = arith.constant 0 : i32
    %c0_i32_1 = arith.constant 0 : i32
    return %c0_i32, %c0_i32_0 : i32, i32
  }
  func.func @transform_3(%arg0: i32) -> (i32, i32) {
    %c0_i32 = arith.constant 0 : i32
    %c0_i32_0 = arith.constant 0 : i32
    %c0_i32_1 = arith.constant 0 : i32
    return %c0_i32, %c0_i32_0 : i32, i32
  }
  func.func @transform_4(%arg0: i32) -> (i32, i32) {
    %c0_i32 = arith.constant 0 : i32
    %c0_i32_0 = arith.constant 0 : i32
    %c0_i32_1 = arith.constant 0 : i32
    return %c0_i32, %c0_i32_0 : i32, i32
  }
  func.func @transform_5(%arg0: i32) -> (i32, i32) {
    %c0_i32 = arith.constant 0 : i32
    %c0_i32_0 = arith.constant 0 : i32
    return %arg0, %c0_i32 : i32, i32
  }
  func.func @transform_6(%arg0: i32) -> (i32, i32) {
    %c0_i32 = arith.constant 0 : i32
    %c0_i32_0 = arith.constant 0 : i32
    return %arg0, %c0_i32 : i32, i32
  }
  func.func @transform_7(%arg0: i32) -> (i32, i32) {
    %c0_i32 = arith.constant 0 : i32
    %c0_i32_0 = arith.constant 0 : i32
    return %arg0, %c0_i32 : i32, i32
  }
}

</mosaic_0001>

<llo_original>
// kernel: label_transfer_baseline_forward.1
$region0: #{label_transfer_baseline_forward.1}
  #allocation0 [shape = 'u32[]', space=smem, size = 0x4, offset = 0x4, fixed_abs, tag = 'smem constant byte address 0x4 - core index']
  #allocation1 [shape = 'u32[144,128]{1,0:T(1,128)}', space=vmem, size = 0x12000, scoped, tag = 'internal scratch']
  %s0 = inlined_call_operand.vmem [shape: f32[16,128], index: 0, kind: input, shape index: {}]
  %s1 = inlined_call_operand.vmem [shape: f32[16,128], index: 1, kind: input, shape index: {}]
  %s2 = inlined_call_operand.vmem [shape: f32[1,128], index: 2, kind: input, shape index: {}]
  %s3 = inlined_call_operand.vmem [shape: bf16[128,128], index: 3, kind: input, shape index: {}]
  %s4 = inlined_call_operand.vmem [shape: f32[128,128], index: 4, kind: input, shape index: {}]
  %s5 = inlined_call_operand.vmem [shape: f32[16,128], index: 5, kind: input, shape index: {}]
  %s6 = inlined_call_operand.vmem [shape: f32[96,128], index: 6, kind: output, shape index: {0}]
  %s7 = inlined_call_operand.vmem [shape: f32[96,128], index: 7, kind: output, shape index: {1}]
  %8 = xla_tuple %s6, %s7
  %s9 = sld [smem:[#allocation0]]
  $region65: #{label_transfer_baseline_forward.1} parent=0
    _
  %s11 = ssub.s32 1, %s9
  %s12 = scalar_select 0, %s11, %s9
  loop: start=0, step=1, limit=4
  $region2: #{label_transfer_baseline_forward.1} parent=0 // loop_pre_header
    _
  $region3: #{label_transfer_baseline_forward.1} parent=0 // loop_header
    %s14 = sphi 0, %s18
    %p15 = scmp.ge.s32.totalorder %s14, 4
    %s24 = sphi 0, %s26
    %s27 = sphi 0, %s24
    %s28 = sphi 0, %s27
    %s44 = sphi 0, %s28
    %s50 = sphi 0, %s52
    %s53 = sphi 0, %s50
    %s54 = sphi 0, %s53
    %s70 = sphi 0, %s54
    %s74 = sphi 0, %s74
    %s76 = sphi 0, %s74
    %s77 = sphi 0, %s76
    %s91 = sphi 0, %s77
    %s95 = sphi 0, %s95
    %s97 = sphi 0, %s95
    %s98 = sphi 0, %s97
    %s112 = sphi 0, %s98
    %s116 = sphi 0, %s116
    %s118 = sphi 0, %s116
    %s119 = sphi 0, %s118
    %s133 = sphi 0, %s119
    %s139 = sphi 0, %s141
    %s142 = sphi 0, %s139
    %s143 = sphi 0, %s142
    %s159 = sphi 0, %s143
    %s165 = sphi 0, %s167
    %s168 = sphi 0, %s165
    %s169 = sphi 0, %s168
    %s185 = sphi 0, %s169
    %s191 = sphi 0, %s193
    %s194 = sphi 0, %s191
    %s195 = sphi 0, %s194
    %s211 = sphi 0, %s195
  $region4: #{label_transfer_baseline_forward.1} parent=0 // loop_header_branch
    %17 = sbr.rel (%p15) target = $region8
  $region5: #{label_transfer_baseline_forward.1} parent=0 // loop_body
    %s19 = ssub.s32 %s14, 1
    %s20 = ssub.s32 %s14, 2
    %s21 = sadd.s32 %s14, 1
    %s22 = ssub.s32 %s14, %s21
    %p23 = scmp.eq.s32.totalorder %s22, 0
    %s25 = sadd.s32 %s24, 1
    %s26 = scalar_select %p23, %s24, %s25
    %p29 = pneg %p23
    %p30 = scmp.eq.s32.totalorder %s14, 1
    %p31 = por %p29, %p30
    %p32 = scmp.ne.s32.totalorder %s24, %s27
    %p33 = scmp.eq.s32.totalorder %s14, 0
    %p34 = por %p32, %p33
    %p35 = scmp.ne.s32.totalorder %s24, %s27
    %p36 = scmp.eq.s32.totalorder %s19, 1
    %p37 = por %p35, %p36
    %p38 = scmp.ne.s32.totalorder %s27, %s28
    %p39 = scmp.eq.s32.totalorder %s19, 0
    %p40 = por %p38, %p39
    %p41 = scmp.ne.s32.totalorder %s27, %s28
    %p42 = scmp.eq.s32.totalorder %s20, 1
    %p43 = por %p41, %p42
    %p45 = scmp.ne.s32.totalorder %s28, %s44
    %p46 = scmp.eq.s32.totalorder %s20, 0
    %p47 = por %p45, %p46
    %s48 = ssub.s32 %s14, %s21
    %p49 = scmp.eq.s32.totalorder %s48, 0
    %s51 = sadd.s32 %s50, 1
    %s52 = scalar_select %p49, %s50, %s51
    %p55 = pneg %p49
    %p56 = scmp.eq.s32.totalorder %s14, 1
    %p57 = por %p55, %p56
    %p58 = scmp.ne.s32.totalorder %s50, %s53
    %p59 = scmp.eq.s32.totalorder %s14, 0
    %p60 = por %p58, %p59
    %p61 = scmp.ne.s32.totalorder %s50, %s53
    %p62 = scmp.eq.s32.totalorder %s19, 1
    %p63 = por %p61, %p62
    %p64 = scmp.ne.s32.totalorder %s53, %s54
    %p65 = scmp.eq.s32.totalorder %s19, 0
    %p66 = por %p64, %p65
    %p67 = scmp.ne.s32.totalorder %s53, %s54
    %p68 = scmp.eq.s32.totalorder %s20, 1
    %p69 = por %p67, %p68
    %p71 = scmp.ne.s32.totalorder %s54, %s70
    %p72 = scmp.eq.s32.totalorder %s20, 0
    %p73 = por %p71, %p72
    %s75 = sadd.s32 %s74, 1
    %p78 = scmp.eq.s32.totalorder %s14, 1
    %p79 = scmp.ne.s32.totalorder %s74, %s76
    %p80 = scmp.eq.s32.totalorder %s14, 0
    %p81 = por %p79, %p80
    %p82 = scmp.ne.s32.totalorder %s74, %s76
    %p83 = scmp.eq.s32.totalorder %s19, 1
    %p84 = por %p82, %p83
    %p85 = scmp.ne.s32.totalorder %s76, %s77
    %p86 = scmp.eq.s32.totalorder %s19, 0
    %p87 = por %p85, %p86
    %p88 = scmp.ne.s32.totalorder %s76, %s77
    %p89 = scmp.eq.s32.totalorder %s20, 1
    %p90 = por %p88, %p89
    %p92 = scmp.ne.s32.totalorder %s77, %s91
    %p93 = scmp.eq.s32.totalorder %s20, 0
    %p94 = por %p92, %p93
    %s96 = sadd.s32 %s95, 1
    %p99 = scmp.eq.s32.totalorder %s14, 1
    %p100 = scmp.ne.s32.totalorder %s95, %s97
    %p101 = scmp.eq.s32.totalorder %s14, 0
    %p102 = por %p100, %p101
    %p103 = scmp.ne.s32.totalorder %s95, %s97
    %p104 = scmp.eq.s32.totalorder %s19, 1
    %p105 = por %p103, %p104
    %p106 = scmp.ne.s32.totalorder %s97, %s98
    %p107 = scmp.eq.s32.totalorder %s19, 0
    %p108 = por %p106, %p107
    %p109 = scmp.ne.s32.totalorder %s97, %s98
    %p110 = scmp.eq.s32.totalorder %s20, 1
    %p111 = por %p109, %p110
    %p113 = scmp.ne.s32.totalorder %s98, %s112
    %p114 = scmp.eq.s32.totalorder %s20, 0
    %p115 = por %p113, %p114
    %s117 = sadd.s32 %s116, 1
    %p120 = scmp.eq.s32.totalorder %s14, 1
    %p121 = scmp.ne.s32.totalorder %s116, %s118
    %p122 = scmp.eq.s32.totalorder %s14, 0
    %p123 = por %p121, %p122
    %p124 = scmp.ne.s32.totalorder %s116, %s118
    %p125 = scmp.eq.s32.totalorder %s19, 1
    %p126 = por %p124, %p125
    %p127 = scmp.ne.s32.totalorder %s118, %s119
    %p128 = scmp.eq.s32.totalorder %s19, 0
    %p129 = por %p127, %p128
    %p130 = scmp.ne.s32.totalorder %s118, %s119
    %p131 = scmp.eq.s32.totalorder %s20, 1
    %p132 = por %p130, %p131
    %p134 = scmp.ne.s32.totalorder %s119, %s133
    %p135 = scmp.eq.s32.totalorder %s20, 0
    %p136 = por %p134, %p135
    %s137 = ssub.s32 %s14, %s21
    %p138 = scmp.eq.s32.totalorder %s137, 0
    %s140 = sadd.s32 %s139, 1
    %s141 = scalar_select %p138, %s139, %s140
    %p144 = pneg %p138
    %p145 = scmp.eq.s32.totalorder %s14, 1
    %p146 = por %p144, %p145
    %p147 = scmp.ne.s32.totalorder %s139, %s142
    %p148 = scmp.eq.s32.totalorder %s14, 0
    %p149 = por %p147, %p148
    %p150 = scmp.ne.s32.totalorder %s139, %s142
    %p151 = scmp.eq.s32.totalorder %s19, 1
    %p152 = por %p150, %p151
    %p153 = scmp.ne.s32.totalorder %s142, %s143
    %p154 = scmp.eq.s32.totalorder %s19, 0
    %p155 = por %p153, %p154
    %p156 = scmp.ne.s32.totalorder %s142, %s143
    %p157 = scmp.eq.s32.totalorder %s20, 1
    %p158 = por %p156, %p157
    %p160 = scmp.ne.s32.totalorder %s143, %s159
    %p161 = scmp.eq.s32.totalorder %s20, 0
    %p162 = por %p160, %p161
    %s163 = ssub.s32 %s14, %s21
    %p164 = scmp.eq.s32.totalorder %s163, 0
    %s166 = sadd.s32 %s165, 1
    %s167 = scalar_select %p164, %s165, %s166
    %p170 = pneg %p164
    %p171 = scmp.eq.s32.totalorder %s14, 1
    %p172 = por %p170, %p171
    %p173 = scmp.ne.s32.totalorder %s165, %s168
    %p174 = scmp.eq.s32.totalorder %s14, 0
    %p175 = por %p173, %p174
    %p176 = scmp.ne.s32.totalorder %s165, %s168
    %p177 = scmp.eq.s32.totalorder %s19, 1
    %p178 = por %p176, %p177
    %p179 = scmp.ne.s32.totalorder %s168, %s169
    %p180 = scmp.eq.s32.totalorder %s19, 0
    %p181 = por %p179, %p180
    %p182 = scmp.ne.s32.totalorder %s168, %s169
    %p183 = scmp.eq.s32.totalorder %s20, 1
    %p184 = por %p182, %p183
    %p186 = scmp.ne.s32.totalorder %s169, %s185
    %p187 = scmp.eq.s32.totalorder %s20, 0
    %p188 = por %p186, %p187
    %s189 = ssub.s32 %s14, %s21
    %p190 = scmp.eq.s32.totalorder %s189, 0
    %s192 = sadd.s32 %s191, 1
    %s193 = scalar_select %p190, %s191, %s192
    %p196 = pneg %p190
    %p197 = scmp.eq.s32.totalorder %s14, 1
    %p198 = por %p196, %p197
    %p199 = scmp.ne.s32.totalorder %s191, %s194
    %p200 = scmp.eq.s32.totalorder %s14, 0
    %p201 = por %p199, %p200
    %p202 = scmp.ne.s32.totalorder %s191, %s194
    %p203 = scmp.eq.s32.totalorder %s19, 1
    %p204 = por %p202, %p203
    %p205 = scmp.ne.s32.totalorder %s194, %s195
    %p206 = scmp.eq.s32.totalorder %s19, 0
    %p207 = por %p205, %p206
    %p208 = scmp.ne.s32.totalorder %s194, %s195
    %p209 = scmp.eq.s32.totalorder %s20, 1
    %p210 = por %p208, %p209
    %p212 = scmp.ne.s32.totalorder %s195, %s211
    %p213 = scmp.eq.s32.totalorder %s20, 0
    %p214 = por %p212, %p213
    %p215 = scmp.le.s32.totalorder 1, %s14
    %p216 = scmp.lt.s32.totalorder %s14, 3
    %p217 = pnand %p215, %p216
    %p218 = pneg %p217
    // Predicated region
    $region9: #{label_transfer_baseline_forward.1} parent=5 // pred_check
      _
    $region10: #{label_transfer_baseline_forward.1} parent=5 // pred_check_branch
      %220 = sbr.rel (%p217) target = $region12
    $region11: #{label_transfer_baseline_forward.1} parent=5 // pred_region
      %s221 = ssub.s32 %s14, 1
      // Predicated region
      $region13: #{label_transfer_baseline_forward.1} parent=11 // pred_check
        %p222 = pneg %p87
      $region14: #{label_transfer_baseline_forward.1} parent=11 // pred_check_branch
        %224 = sbr.rel (%p222) target = $region16
      $region15: #{label_transfer_baseline_forward.1} parent=11 // pred_region
        _
      $region16: #{label_transfer_baseline_forward.1} parent=11 // pred_fallthru
        _
      // Predicated region
      $region17: #{label_transfer_baseline_forward.1} parent=11 // pred_check
        %p225 = pneg %p108
      $region18: #{label_transfer_baseline_forward.1} parent=11 // pred_check_branch
        %227 = sbr.rel (%p225) target = $region20
      $region19: #{label_transfer_baseline_forward.1} parent=11 // pred_region
        _
      $region20: #{label_transfer_baseline_forward.1} parent=11 // pred_fallthru
        _
      // Predicated region
      $region21: #{label_transfer_baseline_forward.1} parent=11 // pred_check
        %p228 = pneg %p129
      $region22: #{label_transfer_baseline_forward.1} parent=11 // pred_check_branch
        %230 = sbr.rel (%p228) target = $region24
      $region23: #{label_transfer_baseline_forward.1} parent=11 // pred_region
        _
      $region24: #{label_transfer_baseline_forward.1} parent=11 // pred_fallthru
        _
    $region12: #{label_transfer_baseline_forward.1} parent=5 // pred_fallthru
      _
    %p231 = scmp.lt.s32.totalorder %s14, 2
    // Predicated region
    $region25: #{label_transfer_baseline_forward.1} parent=5 // pred_check
      %p232 = pneg %p231
    $region26: #{label_transfer_baseline_forward.1} parent=5 // pred_check_branch
      %234 = sbr.rel (%p232) target = $region28
    $region27: #{label_transfer_baseline_forward.1} parent=5 // pred_region
      // Predicated region
      $region29: #{label_transfer_baseline_forward.1} parent=27 // pred_check
        %p235 = pneg %p34
      $region30: #{label_transfer_baseline_forward.1} parent=27 // pred_check_branch
        %237 = sbr.rel (%p235) target = $region32
      $region31: #{label_transfer_baseline_forward.1} parent=27 // pred_region
        %p238 = scmp.lt.s32.totalorder %s14, 1
        %s239 = scalar_select %p238, %s14, 1
        %s240 = smul.addr %s239, 8
        %s241 = scalar_lea.vmem %s0, %s240
      $region32: #{label_transfer_baseline_forward.1} parent=27 // pred_fallthru
        _
      // Predicated region
      $region33: #{label_transfer_baseline_forward.1} parent=27 // pred_check
        %p242 = pneg %p60
      $region34: #{label_transfer_baseline_forward.1} parent=27 // pred_check_branch
        %244 = sbr.rel (%p242) target = $region36
      $region35: #{label_transfer_baseline_forward.1} parent=27 // pred_region
        %p245 = scmp.lt.s32.totalorder %s14, 1
        %s246 = scalar_select %p245, %s14, 1
        %s247 = smul.addr %s246, 8
        %s248 = scalar_lea.vmem %s1, %s247
      $region36: #{label_transfer_baseline_forward.1} parent=27 // pred_fallthru
        _
      // Predicated region
      $region37: #{label_transfer_baseline_forward.1} parent=27 // pred_check
        %p249 = pneg %p149
      $region38: #{label_transfer_baseline_forward.1} parent=27 // pred_check_branch
        %251 = sbr.rel (%p249) target = $region40
      $region39: #{label_transfer_baseline_forward.1} parent=27 // pred_region
        %p252 = scmp.lt.s32.totalorder %s14, 1
        %s253 = scalar_select %p252, %s14, 1
        %s254 = smul.addr %s253, 8
        %s255 = scalar_lea.vmem %s5, %s254
      $region40: #{label_transfer_baseline_forward.1} parent=27 // pred_fallthru
        _
    $region28: #{label_transfer_baseline_forward.1} parent=5 // pred_fallthru
      _
    %p256 = scmp.le.s32.totalorder 1, %s14
    %p257 = scmp.lt.s32.totalorder %s14, 3
    %p258 = pnand %p256, %p257
    %p259 = pneg %p258
    // Predicated region
    $region41: #{label_transfer_baseline_forward.1} parent=5 // pred_check
      _
    $region42: #{label_transfer_baseline_forward.1} parent=5 // pred_check_branch
      %261 = sbr.rel (%p258) target = $region44
    $region43: #{label_transfer_baseline_forward.1} parent=5 // pred_region
      %s262 = ssub.s32 %s14, 1
      %p263 = scmp.lt.s32.totalorder %s19, 1
      %s264 = scalar_select %p263, %s19, 1
      %s265 = smul.addr %s264, 8
      %s266 = scalar_lea.vmem %s0, %s265
      %p267 = pneg %p40
      %p268 = pneg %p37
      %p269 = scmp.lt.s32.totalorder %s19, 1
      %s270 = scalar_select %p269, %s19, 1
      %s271 = smul.addr %s270, 8
      %s272 = scalar_lea.vmem %s1, %s271
      %p273 = pneg %p66
      %p274 = pneg %p63
      %p275 = pneg %p87
      %p276 = pneg %p84
      %p277 = pneg %p108
      %p278 = pneg %p105
      %p279 = pneg %p129
      %p280 = pneg %p126
      %p281 = scmp.lt.s32.totalorder %s19, 1
      %s282 = scalar_select %p281, %s19, 1
      %s283 = smul.addr %s282, 8
      %s284 = scalar_lea.vmem %s5, %s283
      %p285 = pneg %p155
      %p286 = pneg %p152
      %p287 = pneg %p181
      %p288 = pneg %p178
      %s289 = smul.u32 6, %s19
      %p290 = scmp.lt.s32.totalorder %s289, 11
      %s291 = scalar_select %p290, %s289, 11
      %s292 = smul.addr %s291, 8
      %s293 = scalar_lea.vmem %s6, %s292
      %p294 = pneg %p207
      %p295 = pneg %p204
      %s296 = smul.u32 6, %s19
      %p297 = scmp.lt.s32.totalorder %s296, 11
      %s298 = scalar_select %p297, %s296, 11
      %s299 = smul.addr %s298, 8
      %s300 = scalar_lea.vmem %s7, %s299
      %p301 = scmp.lt.s32.totalorder %s19, 1
      %s302 = scalar_select %p301, %s19, 1
      %s303 = smul.addr %s302, 8
      %s304 = scalar_lea.vmem %s0, %s303
      %p305 = scmp.lt.s32.totalorder %s19, 1
      %s306 = scalar_select %p305, %s19, 1
      %s307 = smul.addr %s306, 8
      %s308 = scalar_lea.vmem %s1, %s307
      %p309 = scmp.lt.s32.totalorder %s19, 1
      %s310 = scalar_select %p309, %s19, 1
      %s311 = smul.addr %s310, 8
      %s312 = scalar_lea.vmem %s5, %s311
      %s313 = smul.u32 6, %s19
      %p314 = scmp.lt.s32.totalorder %s313, 11
      %s315 = scalar_select %p314, %s313, 11
      %s316 = smul.addr %s315, 8
      %s317 = scalar_lea.vmem %s6, %s316
      %s318 = smul.u32 6, %s19
      %s319 = smul.u32 6, %s19
      %p320 = scmp.lt.s32.totalorder %s319, 11
      %s321 = scalar_select %p320, %s319, 11
      %s322 = smul.addr %s321, 8
      %s323 = scalar_lea.vmem %s7, %s322
      %s324 = smul.u32 6, %s19
      %v326 = vld [vmem:[%s304] sm:$0xff]
      %v327 = vld [vmem:[%s308] sm:$0xff]
      %v328 = vld [vmem:[%s2] sm:$0x1]
      %v329 = vld [vmem:[%s3] sm:$0xf]
      %v330 = vld [vmem:[%s3 + $0x4] sm:$0xf]
      %v331 = vld [vmem:[%s3 + $0x8] sm:$0xf]
      %v332 = vld [vmem:[%s3 + $0xc] sm:$0xf]
      %v333 = vld [vmem:[%s3 + $0x10] sm:$0xf]
      %v334 = vld [vmem:[%s3 + $0x14] sm:$0xf]
      %v335 = vld [vmem:[%s3 + $0x18] sm:$0xf]
      %v336 = vld [vmem:[%s3 + $0x1c] sm:$0xf]
      %v337 = vld [vmem:[%s3 + $0x20] sm:$0xf]
      %v338 = vld [vmem:[%s3 + $0x24] sm:$0xf]
      %v339 = vld [vmem:[%s3 + $0x28] sm:$0xf]
      %v340 = vld [vmem:[%s3 + $0x2c] sm:$0xf]
      %v341 = vld [vmem:[%s3 + $0x30] sm:$0xf]
      %v342 = vld [vmem:[%s3 + $0x34] sm:$0xf]
      %v343 = vld [vmem:[%s3 + $0x38] sm:$0xf]
      %v344 = vld [vmem:[%s3 + $0x3c] sm:$0xf]
      %v345 = vld [vmem:[%s4] sm:$0xff]
      %v346 = vld [vmem:[%s4 + $0x8] sm:$0xff]
      %v347 = vld [vmem:[%s4 + $0x10] sm:$0xff]
      %v348 = vld [vmem:[%s4 + $0x18] sm:$0xff]
      %v349 = vld [vmem:[%s4 + $0x20] sm:$0xff]
      %v350 = vld [vmem:[%s4 + $0x28] sm:$0xff]
      %v351 = vld [vmem:[%s4 + $0x30] sm:$0xff]
      %v352 = vld [vmem:[%s4 + $0x38] sm:$0xff]
      %v353 = vld [vmem:[%s4 + $0x40] sm:$0xff]
      %v354 = vld [vmem:[%s4 + $0x48] sm:$0xff]
      %v355 = vld [vmem:[%s4 + $0x50] sm:$0xff]
      %v356 = vld [vmem:[%s4 + $0x58] sm:$0xff]
      %v357 = vld [vmem:[%s4 + $0x60] sm:$0xff]
      %v358 = vld [vmem:[%s4 + $0x68] sm:$0xff]
      %v359 = vld [vmem:[%s4 + $0x70] sm:$0xff]
      %v360 = vld [vmem:[%s4 + $0x78] sm:$0xff]
      %v361 = vld [vmem:[%s312] sm:$0xff]
      %v362 = vpack.c.bf16 %v326, %v326
      %v379 = vunpack.c.l.b16 %v329
      %v380 = vunpack.c.l.b16 %v330
      %v381 = vunpack.c.l.b16 %v331
      %v382 = vunpack.c.l.b16 %v332
      %v383 = vunpack.c.l.b16 %v333
      %v384 = vunpack.c.l.b16 %v334
      %v385 = vunpack.c.l.b16 %v335
      %v386 = vunpack.c.l.b16 %v336
      %v387 = vunpack.c.l.b16 %v337
      %v388 = vunpack.c.l.b16 %v338
      %v389 = vunpack.c.l.b16 %v339
      %v390 = vunpack.c.l.b16 %v340
      %v391 = vunpack.c.l.b16 %v341
      %v392 = vunpack.c.l.b16 %v342
      %v393 = vunpack.c.l.b16 %v343
      %v394 = vunpack.c.l.b16 %v344
      %v395 = vpack.c.b16 %v380, %v379
      %v396 = vpack.c.b16 %v382, %v381
      %v397 = vpack.c.b16 %v384, %v383
      %v398 = vpack.c.b16 %v386, %v385
      %v399 = vpack.c.b16 %v388, %v387
      %v400 = vpack.c.b16 %v390, %v389
      %v401 = vpack.c.b16 %v392, %v391
      %v402 = vpack.c.b16 %v394, %v393
      %411 = vmatprep.subr.bf16.mxu0 0
      %412 = vmatpush1.bf16.xpose.msra.mxu0 %v395
      %413 = vmatprep.subr.bf16.mxu0 0
      %414 = vmatpush1.bf16.xpose.msra.mxu0 %v396
      %415 = vmatprep.subr.bf16.mxu0 0
      %416 = vmatpush1.bf16.xpose.msra.mxu0 %v397
      %417 = vmatprep.subr.bf16.mxu0 0
      %418 = vmatpush1.bf16.xpose.msra.mxu0 %v398
      %419 = vmatprep.subr.bf16.mxu0 0
      %420 = vmatpush1.bf16.xpose.msra.mxu0 %v399
      %421 = vmatprep.subr.bf16.mxu0 0
      %422 = vmatpush1.bf16.xpose.msra.mxu0 %v400
      %423 = vmatprep.subr.bf16.mxu0 0
      %424 = vmatpush1.bf16.xpose.msra.mxu0 %v401
      %425 = vmatprep.subr.bf16.mxu0 0
      %426 = vmatpush1.bf16.xpose.msra.mxu0 %v402
      %427 = vmatprep.subr.bf16.mxu0 0
      %428 = vmatpush1.bf16.xpose.msra.mxu0 0
      %429 = vmatprep.subr.bf16.mxu0 0
      %430 = vmatpush1.bf16.xpose.msra.mxu0 0
      %431 = vmatprep.subr.bf16.mxu0 0
      %432 = vmatpush1.bf16.xpose.msra.mxu0 0
      %433 = vmatprep.subr.bf16.mxu0 0
      %434 = vmatpush1.bf16.xpose.msra.mxu0 0
      %435 = vmatprep.subr.bf16.mxu0 0
      %436 = vmatpush1.bf16.xpose.msra.mxu0 0
      %437 = vmatprep.subr.bf16.mxu0 0
      %438 = vmatpush1.bf16.xpose.msra.mxu0 0
      %439 = vmatprep.subr.bf16.mxu0 0
      %440 = vmatpush1.bf16.xpose.msra.mxu0 0
      %441 = vmatprep.subr.bf16.mxu0 0
      %442 = vmatpush1.bf16.xpose.msra.mxu0 0
      %443 = vmatprep.mubr.bf16.mxu0 0
      %444 = vmatmul.mubr.bf16.gmra.mrb[0].mxu0 %v362
      %v445 = vpop.f32.mrb[0].mxu0
      %v446 = vadd.f32 0.0, %v445
      %v447 = vpop.f32.mrb[0].mxu0
      %v448 = vpop.f32.mrb[0].mxu0
      %v449 = vpop.f32.mrb[0].mxu0
      %450 = vdwg.mxu0
      %v451 = vmul.f32 %v446, 2.0
      %v453 = vlaneseq
      %v454 = vshrl.u32 %v453, 7
      %v455 = vsub.s32 0, %v454
      %v456 = vrot.slane %v328, %v455
      %v458 = vsub.f32 %v456, %v451
      %v459 = vlaneseq
      %v460 = vand.u32 %v459, 127
      %461 = vmax.xlane.f32.xlu0 %v327
      %v462 = vpop.xlane.xlu0 %461
      %vm463 = vcmp.eq.f32.partialorder %v327, %v462
      %v464 = vsel %vm463, %v460, 128
      %v465 = vand.u32 %v464, 65535
      %v466 = vshra.s32 %v464, 16
      %v467 = vcvt.s32.f32 %v465
      %v468 = vcvt.s32.f32 %v466
      %469 = vmin.xlane.f32.xlu0 %v468
      %v470 = vpop.xlane.xlu0 %469
      %vm471 = vcmp.eq.f32.partialorder %v468, %v470
      %v472 = vsel %vm471, %v467, inf
      %473 = vmin.xlane.f32.xlu0 %v472
      %v474 = vpop.xlane.xlu0 %473
      %v475 = vcvt.f32.s32 %v474
      %v476 = vcvt.f32.s32 %v470
      %v477 = vshll.u32 %v476, 16
      %v478 = vadd.s32 %v477, %v475
      %vm479 = vcmp.eq.s32.totalorder %v460, %v478
      %v480 = vsel %vm479, 1, 0
      %v481 = vcvt.s32.f32 %v480
      %v482 = vsel %vm479, -inf, %v327
      %483 = vmax.xlane.f32.xlu0 %v482
      %v484 = vpop.xlane.xlu0 %483
      %vm485 = vcmp.eq.f32.partialorder %v482, %v484
      %v486 = vsel %vm485, %v460, 128
      %v487 = vand.u32 %v486, 65535
      %v488 = vshra.s32 %v486, 16
      %v489 = vcvt.s32.f32 %v487
      %v490 = vcvt.s32.f32 %v488
      %491 = vmin.xlane.f32.xlu0 %v490
      %v492 = vpop.xlane.xlu0 %491
      %vm493 = vcmp.eq.f32.partialorder %v490, %v492
      %v494 = vsel %vm493, %v489, inf
      %495 = vmin.xlane.f32.xlu0 %v494
      %v496 = vpop.xlane.xlu0 %495
      %v497 = vcvt.f32.s32 %v496
      %v498 = vcvt.f32.s32 %v492
      %v499 = vshll.u32 %v498, 16
      %v500 = vadd.s32 %v499, %v497
      %vm501 = vcmp.eq.s32.totalorder %v460, %v500
      %v502 = vsel %vm501, 1, 0
      %v503 = vcvt.s32.f32 %v502
      %v504 = vsel %vm501, -inf, %v482
      %505 = vmax.xlane.f32.xlu0 %v504
      %v506 = vpop.xlane.xlu0 %505
      %vm507 = vcmp.eq.f32.partialorder %v504, %v506
      %v508 = vsel %vm507, %v460, 128
      %v509 = vand.u32 %v508, 65535
      %v510 = vshra.s32 %v508, 16
      %v511 = vcvt.s32.f32 %v509
      %v512 = vcvt.s32.f32 %v510
      %513 = vmin.xlane.f32.xlu0 %v512
      %v514 = vpop.xlane.xlu0 %513
      %vm515 = vcmp.eq.f32.partialorder %v512, %v514
      %v516 = vsel %vm515, %v511, inf
      %517 = vmin.xlane.f32.xlu0 %v516
      %v518 = vpop.xlane.xlu0 %517
      %v519 = vcvt.f32.s32 %v518
      %v520 = vcvt.f32.s32 %v514
      %v521 = vshll.u32 %v520, 16
      %v522 = vadd.s32 %v521, %v519
      %vm523 = vcmp.eq.s32.totalorder %v460, %v522
      %v524 = vsel %vm523, 1, 0
      %v525 = vcvt.s32.f32 %v524
      %v526 = vsel %vm523, -inf, %v504
      %527 = vmax.xlane.f32.xlu0 %v526
      %v528 = vpop.xlane.xlu0 %527
      %vm529 = vcmp.eq.f32.partialorder %v526, %v528
      %v530 = vsel %vm529, %v460, 128
      %v531 = vand.u32 %v530, 65535
      %v532 = vshra.s32 %v530, 16
      %v533 = vcvt.s32.f32 %v531
      %v534 = vcvt.s32.f32 %v532
      %535 = vmin.xlane.f32.xlu0 %v534
      %v536 = vpop.xlane.xlu0 %535
      %vm537 = vcmp.eq.f32.partialorder %v534, %v536
      %v538 = vsel %vm537, %v533, inf
      %539 = vmin.xlane.f32.xlu0 %v538
      %v540 = vpop.xlane.xlu0 %539
      %v541 = vcvt.f32.s32 %v540
      %v542 = vcvt.f32.s32 %v536
      %v543 = vshll.u32 %v542, 16
      %v544 = vadd.s32 %v543, %v541
      %vm545 = vcmp.eq.s32.totalorder %v460, %v544
      %v546 = vsel %vm545, 1, 0
      %v547 = vcvt.s32.f32 %v546
      %548 = vmax.xlane.f32.xlu0 %v458
      %v549 = vpop.xlane.xlu0 %548
      %vm550 = vcmp.eq.f32.partialorder %v458, %v549
      %v551 = vsel %vm550, %v460, 128
      %v552 = vand.u32 %v551, 65535
      %v553 = vshra.s32 %v551, 16
      %v554 = vcvt.s32.f32 %v552
      %v555 = vcvt.s32.f32 %v553
      %556 = vmin.xlane.f32.xlu0 %v555
      %v557 = vpop.xlane.xlu0 %556
      %vm558 = vcmp.eq.f32.partialorder %v555, %v557
      %v559 = vsel %vm558, %v554, inf
      %560 = vmin.xlane.f32.xlu0 %v559
      %v561 = vpop.xlane.xlu0 %560
      %v562 = vcvt.f32.s32 %v561
      %v563 = vcvt.f32.s32 %v557
      %v564 = vshll.u32 %v563, 16
      %v565 = vadd.s32 %v564, %v562
      %vm566 = vcmp.eq.s32.totalorder %v460, %v565
      %v567 = vsel %vm566, 1, 0
      %v568 = vcvt.s32.f32 %v567
      %v569 = vsel %vm566, -inf, %v458
      %570 = vmax.xlane.f32.xlu0 %v569
      %v571 = vpop.xlane.xlu0 %570
      %vm572 = vcmp.eq.f32.partialorder %v569, %v571
      %v573 = vsel %vm572, %v460, 128
      %v574 = vand.u32 %v573, 65535
      %v575 = vshra.s32 %v573, 16
      %v576 = vcvt.s32.f32 %v574
      %v577 = vcvt.s32.f32 %v575
      %578 = vmin.xlane.f32.xlu0 %v577
      %v579 = vpop.xlane.xlu0 %578
      %vm580 = vcmp.eq.f32.partialorder %v577, %v579
      %v581 = vsel %vm580, %v576, inf
      %582 = vmin.xlane.f32.xlu0 %v581
      %v583 = vpop.xlane.xlu0 %582
      %v584 = vcvt.f32.s32 %v583
      %v585 = vcvt.f32.s32 %v579
      %v586 = vshll.u32 %v585, 16
      %v587 = vadd.s32 %v586, %v584
      %vm588 = vcmp.eq.s32.totalorder %v460, %v587
      %v589 = vsel %vm588, 1, 0
      %v590 = vcvt.s32.f32 %v589
      %v591 = vsel %vm588, -inf, %v569
      %592 = vmax.xlane.f32.xlu0 %v591
      %v593 = vpop.xlane.xlu0 %592
      %vm594 = vcmp.eq.f32.partialorder %v591, %v593
      %v595 = vsel %vm594, %v460, 128
      %v596 = vand.u32 %v595, 65535
      %v597 = vshra.s32 %v595, 16
      %v598 = vcvt.s32.f32 %v596
      %v599 = vcvt.s32.f32 %v597
      %600 = vmin.xlane.f32.xlu0 %v599
      %v601 = vpop.xlane.xlu0 %600
      %vm602 = vcmp.eq.f32.partialorder %v599, %v601
      %v603 = vsel %vm602, %v598, inf
      %604 = vmin.xlane.f32.xlu0 %v603
      %v605 = vpop.xlane.xlu0 %604
      %v606 = vcvt.f32.s32 %v605
      %v607 = vcvt.f32.s32 %v601
      %v608 = vshll.u32 %v607, 16
      %v609 = vadd.s32 %v608, %v606
      %vm610 = vcmp.eq.s32.totalorder %v460, %v609
      %v611 = vsel %vm610, 1, 0
      %v612 = vcvt.s32.f32 %v611
      %v613 = vsel %vm610, -inf, %v591
      %614 = vmax.xlane.f32.xlu0 %v613
      %v615 = vpop.xlane.xlu0 %614
      %vm616 = vcmp.eq.f32.partialorder %v613, %v615
      %v617 = vsel %vm616, %v460, 128
      %v618 = vand.u32 %v617, 65535
      %v619 = vshra.s32 %v617, 16
      %v620 = vcvt.s32.f32 %v618
      %v621 = vcvt.s32.f32 %v619
      %622 = vmin.xlane.f32.xlu0 %v621
      %v623 = vpop.xlane.xlu0 %622
      %vm624 = vcmp.eq.f32.partialorder %v621, %v623
      %v625 = vsel %vm624, %v620, inf
      %626 = vmin.xlane.f32.xlu0 %v625
      %v627 = vpop.xlane.xlu0 %626
      %v628 = vcvt.f32.s32 %v627
      %v629 = vcvt.f32.s32 %v623
      %v630 = vshll.u32 %v629, 16
      %v631 = vadd.s32 %v630, %v628
      %vm632 = vcmp.eq.s32.totalorder %v460, %v631
      %v633 = vsel %vm632, 1, 0
      %v634 = vcvt.s32.f32 %v633
      %635 = vmatprep.subr.mxu0 0.0
      %636 = vmatpush1.msra.mxu0 %v345
      %637 = vmatprep.subr.mxu0 0.0
      %638 = vmatpush1.msra.mxu0 %v346
      %639 = vmatprep.subr.mxu0 0.0
      %640 = vmatpush1.msra.mxu0 %v347
      %641 = vmatprep.subr.mxu0 0.0
      %642 = vmatpush1.msra.mxu0 %v348
      %643 = vmatprep.subr.mxu0 0.0
      %644 = vmatpush1.msra.mxu0 %v349
      %645 = vmatprep.subr.mxu0 0.0
      %646 = vmatpush1.msra.mxu0 %v350
      %647 = vmatprep.subr.mxu0 0.0
      %648 = vmatpush1.msra.mxu0 %v351
      %649 = vmatprep.subr.mxu0 0.0
      %650 = vmatpush1.msra.mxu0 %v352
      %651 = vmatprep.subr.mxu0 0.0
      %652 = vmatpush1.msra.mxu0 %v353
      %653 = vmatprep.subr.mxu0 0.0
      %654 = vmatpush1.msra.mxu0 %v354
      %655 = vmatprep.subr.mxu0 0.0
      %656 = vmatpush1.msra.mxu0 %v355
      %657 = vmatprep.subr.mxu0 0.0
      %658 = vmatpush1.msra.mxu0 %v356
      %659 = vmatprep.subr.mxu0 0.0
      %660 = vmatpush1.msra.mxu0 %v357
      %661 = vmatprep.subr.mxu0 0.0
      %662 = vmatpush1.msra.mxu0 %v358
      %663 = vmatprep.subr.mxu0 0.0
      %664 = vmatpush1.msra.mxu0 %v359
      %665 = vmatprep.subr.mxu0 0.0
      %666 = vmatpush1.msra.mxu0 %v360
      %667 = vmatprep.subr.mxu0 0.0
      %668 = vmatpush1.msra.mxu0 0.0
      %669 = vmatprep.subr.mxu0 0.0
      %670 = vmatpush1.msra.mxu0 0.0
      %671 = vmatprep.subr.mxu0 0.0
      %672 = vmatpush1.msra.mxu0 0.0
      %673 = vmatprep.subr.mxu0 0.0
      %674 = vmatpush1.msra.mxu0 0.0
      %675 = vmatprep.subr.mxu0 0.0
      %676 = vmatpush1.msra.mxu0 0.0
      %677 = vmatprep.subr.mxu0 0.0
      %678 = vmatpush1.msra.mxu0 0.0
      %679 = vmatprep.subr.mxu0 0.0
      %680 = vmatpush1.msra.mxu0 0.0
      %681 = vmatprep.subr.mxu0 0.0
      %682 = vmatpush1.msra.mxu0 0.0
      %683 = vmatprep.subr.mxu0 0.0
      %684 = vmatpush1.msra.mxu0 0.0
      %685 = vmatprep.subr.mxu0 0.0
      %686 = vmatpush1.msra.mxu0 0.0
      %687 = vmatprep.subr.mxu0 0.0
      %688 = vmatpush1.msra.mxu0 0.0
      %689 = vmatprep.subr.mxu0 0.0
      %690 = vmatpush1.msra.mxu0 0.0
      %691 = vmatprep.subr.mxu0 0.0
      %692 = vmatpush1.msra.mxu0 0.0
      %693 = vmatprep.subr.mxu0 0.0
      %694 = vmatpush1.msra.mxu0 0.0
      %695 = vmatprep.subr.mxu0 0.0
      %696 = vmatpush1.msra.mxu0 0.0
      %697 = vmatprep.subr.mxu0 0.0
      %698 = vmatpush1.msra.mxu0 0.0
      %699 = vmatprep.mubr.f32.mxu0 0.0
      %700 = vmatmul.mubr.f32.gmra.mrb[0].mxu0 %v481
      %v701 = vpop.f32.mrb[0].mxu0
      %v702 = vadd.f32 0.0, %v701
      %v703 = vpop.f32.mrb[0].mxu0
      %704 = vmatprep.mubr.f32.mxu0 0.0
      %705 = vmatmul.mubr.f32.gmra.mrb[0].mxu0 %v503
      %v706 = vpop.f32.mrb[0].mxu0
      %v707 = vadd.f32 0.0, %v706
      %v708 = vpop.f32.mrb[0].mxu0
      %709 = vmatprep.mubr.f32.mxu0 0.0
      %710 = vmatmul.mubr.f32.gmra.mrb[0].mxu0 %v525
      %v711 = vpop.f32.mrb[0].mxu0
      %v712 = vadd.f32 0.0, %v711
      %v713 = vpop.f32.mrb[0].mxu0
      %714 = vmatprep.mubr.f32.mxu0 0.0
      %715 = vmatmul.mubr.f32.gmra.mrb[0].mxu0 %v547
      %v716 = vpop.f32.mrb[0].mxu0
      %v717 = vadd.f32 0.0, %v716
      %v718 = vpop.f32.mrb[0].mxu0
      %719 = vmatprep.mubr.f32.mxu0 0.0
      %720 = vmatmul.mubr.f32.gmra.mrb[0].mxu0 %v568
      %v721 = vpop.f32.mrb[0].mxu0
      %v722 = vadd.f32 0.0, %v721
      %v723 = vpop.f32.mrb[0].mxu0
      %724 = vmatprep.mubr.f32.mxu0 0.0
      %725 = vmatmul.mubr.f32.gmra.mrb[0].mxu0 %v590
      %v726 = vpop.f32.mrb[0].mxu0
      %v727 = vadd.f32 0.0, %v726
      %v728 = vpop.f32.mrb[0].mxu0
      %729 = vmatprep.mubr.f32.mxu0 0.0
      %730 = vmatmul.mubr.f32.gmra.mrb[0].mxu0 %v612
      %v731 = vpop.f32.mrb[0].mxu0
      %v732 = vadd.f32 0.0, %v731
      %v733 = vpop.f32.mrb[0].mxu0
      %734 = vmatprep.mubr.f32.mxu0 0.0
      %735 = vmatmul.mubr.f32.gmra.mrb[0].mxu0 %v634
      %v736 = vpop.f32.mrb[0].mxu0
      %v737 = vadd.f32 0.0, %v736
      %v738 = vpop.f32.mrb[0].mxu0
      %739 = vdwg.mxu0
      %v740 = vadd.f32 %v702, %v707
      %v741 = vadd.f32 %v740, %v712
      %v742 = vadd.f32 %v741, %v717
      %v743 = vmul.f32 %v742, 0.25
      %v744 = vmin.f32 %v702, %v707
      %v745 = vmax.f32 %v702, %v707
      %v746 = vmin.f32 %v712, %v717
      %v747 = vmax.f32 %v712, %v717
      %v748 = vmax.f32 %v744, %v746
      %v749 = vmin.f32 %v745, %v747
      %v750 = vmin.f32 %v748, %v749
      %v751 = vadd.f32 %v722, %v727
      %v752 = vadd.f32 %v751, %v732
      %v753 = vadd.f32 %v752, %v737
      %v754 = vmul.f32 %v753, 0.25
      %v755 = vmin.f32 %v722, %v727
      %v756 = vmax.f32 %v722, %v727
      %v757 = vmin.f32 %v732, %v737
      %v758 = vmax.f32 %v732, %v737
      %v759 = vmax.f32 %v755, %v757
      %v760 = vmin.f32 %v756, %v758
      %v761 = vmin.f32 %v759, %v760
      %762 = vst [vmem:[%s317] sm:$0xff] %v702
      %763 = vst [vmem:[%s317 + $0x8] sm:$0xff] %v743
      %764 = vst [vmem:[%s317 + $0x10] sm:$0xff] %v750
      %765 = vst [vmem:[%s317 + $0x18] sm:$0xff] %v722
      %766 = vst [vmem:[%s317 + $0x20] sm:$0xff] %v754
      %767 = vst [vmem:[%s317 + $0x28] sm:$0xff] %v761
      %768 = vadd.xlane.f32.xlu0 %v361
      %v769 = vpop.xlane.xlu0 %768
      %v770 = vmul.f32 %v769, 0.0078125
      %v771 = vsub.f32 %v361, %v770
      %v772 = vmul.f32 %v771, %v771
      %773 = vadd.xlane.f32.xlu0 %v772
      %v774 = vpop.xlane.xlu0 %773
      %775 = vadd.xlane.f32.xlu0 %v702
      %v776 = vpop.xlane.xlu0 %775
      %777 = vadd.xlane.f32.xlu0 %v743
      %v778 = vpop.xlane.xlu0 %777
      %779 = vadd.xlane.f32.xlu0 %v750
      %v780 = vpop.xlane.xlu0 %779
      %781 = vadd.xlane.f32.xlu0 %v722
      %v782 = vpop.xlane.xlu0 %781
      %783 = vadd.xlane.f32.xlu0 %v754
      %v784 = vpop.xlane.xlu0 %783
      %785 = vadd.xlane.f32.xlu0 %v761
      %v786 = vpop.xlane.xlu0 %785
      %v787 = vmul.f32 %v776, 0.0078125
      %v788 = vmul.f32 %v778, 0.0078125
      %v789 = vmul.f32 %v780, 0.0078125
      %v790 = vmul.f32 %v782, 0.0078125
      %v791 = vmul.f32 %v784, 0.0078125
      %v792 = vmul.f32 %v786, 0.0078125
      %v793 = vsub.f32 %v702, %v787
      %v794 = vsub.f32 %v743, %v788
      %v795 = vsub.f32 %v750, %v789
      %v796 = vsub.f32 %v722, %v790
      %v797 = vsub.f32 %v754, %v791
      %v798 = vsub.f32 %v761, %v792
      %v799 = vmul.f32 %v793, %v771
      %v800 = vmul.f32 %v794, %v771
      %v801 = vmul.f32 %v795, %v771
      %v802 = vmul.f32 %v796, %v771
      %v803 = vmul.f32 %v797, %v771
      %v804 = vmul.f32 %v798, %v771
      %805 = vadd.xlane.f32.xlu0 %v799
      %v806 = vpop.xlane.xlu0 %805
      %807 = vadd.xlane.f32.xlu0 %v800
      %v808 = vpop.xlane.xlu0 %807
      %809 = vadd.xlane.f32.xlu0 %v801
      %v810 = vpop.xlane.xlu0 %809
      %811 = vadd.xlane.f32.xlu0 %v802
      %v812 = vpop.xlane.xlu0 %811
      %813 = vadd.xlane.f32.xlu0 %v803
      %v814 = vpop.xlane.xlu0 %813
      %815 = vadd.xlane.f32.xlu0 %v804
      %v816 = vpop.xlane.xlu0 %815
      %v817 = vmul.f32 %v793, %v793
      %v818 = vmul.f32 %v794, %v794
      %v819 = vmul.f32 %v795, %v795
      %v820 = vmul.f32 %v796, %v796
      %v821 = vmul.f32 %v797, %v797
      %v822 = vmul.f32 %v798, %v798
      %823 = vadd.xlane.f32.xlu0 %v817
      %v824 = vpop.xlane.xlu0 %823
      %825 = vadd.xlane.f32.xlu0 %v818
      %v826 = vpop.xlane.xlu0 %825
      %827 = vadd.xlane.f32.xlu0 %v819
      %v828 = vpop.xlane.xlu0 %827
      %829 = vadd.xlane.f32.xlu0 %v820
      %v830 = vpop.xlane.xlu0 %829
      %831 = vadd.xlane.f32.xlu0 %v821
      %v832 = vpop.xlane.xlu0 %831
      %833 = vadd.xlane.f32.xlu0 %v822
      %v834 = vpop.xlane.xlu0 %833
      %v835 = vmul.f32 %v824, %v774
      %v836 = vmul.f32 %v826, %v774
      %v837 = vmul.f32 %v828, %v774
      %v838 = vmul.f32 %v830, %v774
      %v839 = vmul.f32 %v832, %v774
      %v840 = vmul.f32 %v834, %v774
      %v841 = vadd.f32 %v835, 1e-12
      %v842 = vadd.f32 %v836, 1e-12
      %v843 = vadd.f32 %v837, 1e-12
      %v844 = vadd.f32 %v838, 1e-12
      %v845 = vadd.f32 %v839, 1e-12
      %v846 = vadd.f32 %v840, 1e-12
      %v847 = vrsqrt.pop %v841
      %v848 = vrsqrt.pop %v842
      %v849 = vrsqrt.pop %v843
      %v850 = vrsqrt.pop %v844
      %v851 = vrsqrt.pop %v845
      %v852 = vrsqrt.pop %v846
      %v853 = vmul.f32 %v806, %v847
      %v854 = vmul.f32 %v808, %v848
      %v855 = vmul.f32 %v810, %v849
      %v856 = vmul.f32 %v812, %v850
      %v857 = vmul.f32 %v814, %v851
      %v858 = vmul.f32 %v816, %v852
      %v859 = vsub.f32 %v702, %v361
      %v860 = vsub.f32 %v743, %v361
      %v861 = vsub.f32 %v750, %v361
      %v862 = vsub.f32 %v722, %v361
      %v863 = vsub.f32 %v754, %v361
      %v864 = vsub.f32 %v761, %v361
      %v865 = vand.u32 2147483647, %v859
      %v866 = vand.u32 2147483647, %v860
      %v867 = vand.u32 2147483647, %v861
      %v868 = vand.u32 2147483647, %v862
      %v869 = vand.u32 2147483647, %v863
      %v870 = vand.u32 2147483647, %v864
      %871 = vadd.xlane.f32.xlu0 %v865
      %v872 = vpop.xlane.xlu0 %871
      %873 = vadd.xlane.f32.xlu0 %v866
      %v874 = vpop.xlane.xlu0 %873
      %875 = vadd.xlane.f32.xlu0 %v867
      %v876 = vpop.xlane.xlu0 %875
      %877 = vadd.xlane.f32.xlu0 %v868
      %v878 = vpop.xlane.xlu0 %877
      %879 = vadd.xlane.f32.xlu0 %v869
      %v880 = vpop.xlane.xlu0 %879
      %881 = vadd.xlane.f32.xlu0 %v870
      %v882 = vpop.xlane.xlu0 %881
      %v883 = vmul.f32 %v872, 0.0078125
      %v884 = vmul.f32 %v874, 0.0078125
      %v885 = vmul.f32 %v876, 0.0078125
      %v886 = vmul.f32 %v878, 0.0078125
      %v887 = vmul.f32 %v880, 0.0078125
      %v888 = vmul.f32 %v882, 0.0078125
      %vm889 = vcmp.eq.s32.totalorder %v460, 0
      %v890 = vsel %vm889, 1, 0
      %v891 = vcvt.s32.f32 %v890
      %893 = vset.pattern.permute.xlu0 0
      %894 = vperm.xlu0 %893, %v853
      %v895 = vpop.permute.xlu0 %894
      %898 = vset.pattern.permute.xlu0 0
      %899 = vperm.xlu0 %898, %v854
      %v900 = vpop.permute.xlu0 %899
      %903 = vset.pattern.permute.xlu0 0
      %904 = vperm.xlu0 %903, %v855
      %v905 = vpop.permute.xlu0 %904
      %908 = vset.pattern.permute.xlu0 0
      %909 = vperm.xlu0 %908, %v856
      %v910 = vpop.permute.xlu0 %909
      %913 = vset.pattern.permute.xlu0 0
      %914 = vperm.xlu0 %913, %v857
      %v915 = vpop.permute.xlu0 %914
      %918 = vset.pattern.permute.xlu0 0
      %919 = vperm.xlu0 %918, %v858
      %v920 = vpop.permute.xlu0 %919
      %v922 = vmul.f32 %v895, %v891
      %v923 = vmul.f32 %v900, %v891
      %v924 = vmul.f32 %v905, %v891
      %v925 = vmul.f32 %v910, %v891
      %v926 = vmul.f32 %v915, %v891
      %v927 = vmul.f32 %v920, %v891
      %vm928 = vcmp.eq.s32.totalorder %v460, 1
      %v929 = vsel %vm928, 1, 0
      %v930 = vcvt.s32.f32 %v929
      %v931 = vmul.f32 %v883, %v930
      %v932 = vmul.f32 %v884, %v930
      %v933 = vmul.f32 %v885, %v930
      %v934 = vmul.f32 %v886, %v930
      %v935 = vmul.f32 %v887, %v930
      %v936 = vmul.f32 %v888, %v930
      %v937 = vadd.f32 %v922, %v931
      %v938 = vadd.f32 %v923, %v932
      %v939 = vadd.f32 %v924, %v933
      %v940 = vadd.f32 %v925, %v934
      %v941 = vadd.f32 %v926, %v935
      %v942 = vadd.f32 %v927, %v936
      %943 = vst [vmem:[%s323] sm:$0xff] %v937
      %944 = vst [vmem:[%s323 + $0x8] sm:$0xff] %v938
      %945 = vst [vmem:[%s323 + $0x10] sm:$0xff] %v939
      %946 = vst [vmem:[%s323 + $0x18] sm:$0xff] %v940
      %947 = vst [vmem:[%s323 + $0x20] sm:$0xff] %v941
      %948 = vst [vmem:[%s323 + $0x28] sm:$0xff] %v942
      %s949 = smul.u32 6, %s19
      %p950 = scmp.lt.s32.totalorder %s949, 11
      %s951 = scalar_select %p950, %s949, 11
      %s952 = smul.addr %s951, 8
      %s953 = scalar_lea.vmem %s6, %s952
      %s954 = smul.u32 6, %s19
      %p955 = scmp.lt.s32.totalorder %s954, 11
      %s956 = scalar_select %p955, %s954, 11
      %s957 = smul.addr %s956, 8
      %s958 = scalar_lea.vmem %s7, %s957
      // Predicated region
      $region45: #{label_transfer_baseline_forward.1} parent=43 // pred_check
        %p959 = pneg %p178
      $region46: #{label_transfer_baseline_forward.1} parent=43 // pred_check_branch
        %961 = sbr.rel (%p959) target = $region48
      $region47: #{label_transfer_baseline_forward.1} parent=43 // pred_region
        %s962 = smul.u32 6, %s19
      $region48: #{label_transfer_baseline_forward.1} parent=43 // pred_fallthru
        _
      // Predicated region
      $region49: #{label_transfer_baseline_forward.1} parent=43 // pred_check
        %p963 = pneg %p204
      $region50: #{label_transfer_baseline_forward.1} parent=43 // pred_check_branch
        %965 = sbr.rel (%p963) target = $region52
      $region51: #{label_transfer_baseline_forward.1} parent=43 // pred_region
        %s966 = smul.u32 6, %s19
      $region52: #{label_transfer_baseline_forward.1} parent=43 // pred_fallthru
        _
    $region44: #{label_transfer_baseline_forward.1} parent=5 // pred_fallthru
      _
    %p967 = scmp.le.s32.totalorder 2, %s14
    // Predicated region
    $region53: #{label_transfer_baseline_forward.1} parent=5 // pred_check
      %p968 = pneg %p967
    $region54: #{label_transfer_baseline_forward.1} parent=5 // pred_check_branch
      %970 = sbr.rel (%p968) target = $region56
    $region55: #{label_transfer_baseline_forward.1} parent=5 // pred_region
      %s971 = ssub.s32 %s14, 2
      // Predicated region
      $region57: #{label_transfer_baseline_forward.1} parent=55 // pred_check
        %p972 = pneg %p184
      $region58: #{label_transfer_baseline_forward.1} parent=55 // pred_check_branch
        %974 = sbr.rel (%p972) target = $region60
      $region59: #{label_transfer_baseline_forward.1} parent=55 // pred_region
        %s975 = smul.u32 6, %s20
        %p976 = scmp.lt.s32.totalorder %s975, 11
        %s977 = scalar_select %p976, %s975, 11
        %s978 = smul.addr %s977, 8
        %s979 = scalar_lea.vmem %s6, %s978
      $region60: #{label_transfer_baseline_forward.1} parent=55 // pred_fallthru
        _
      // Predicated region
      $region61: #{label_transfer_baseline_forward.1} parent=55 // pred_check
        %p980 = pneg %p210
      $region62: #{label_transfer_baseline_forward.1} parent=55 // pred_check_branch
        %982 = sbr.rel (%p980) target = $region64
      $region63: #{label_transfer_baseline_forward.1} parent=55 // pred_region
        %s983 = smul.u32 6, %s20
        %p984 = scmp.lt.s32.totalorder %s983, 11
        %s985 = scalar_select %p984, %s983, 11
        %s986 = smul.addr %s985, 8
        %s987 = scalar_lea.vmem %s7, %s986
      $region64: #{label_transfer_baseline_forward.1} parent=55 // pred_fallthru
        _
    $region56: #{label_transfer_baseline_forward.1} parent=5 // pred_fallthru
      _
  $region6: #{label_transfer_baseline_forward.1} parent=0 // loop_footer
    %s18 = sadd.s32 1, %s14
  $region7: #{label_transfer_baseline_forward.1} parent=0 // loop_footer_branch
    %13 = sbr.rel target = $region3
  $region8: #{label_transfer_baseline_forward.1} parent=0 // loop_exit
    _

</llo_original>
